<compile_context>
chip_gen: v7x
topology: tpu7x:2x2x1
jax: 0.10.0
libtpu: 0.0.40
codegen_flags: <defaults>
</compile_context>

<pallas_src>
import math
from functools import partial

import jax
import jax.numpy as jnp
from jax import lax
from jax.experimental import pallas as pl
from jax.experimental.pallas import tpu as pltpu

_MIB = 1024 * 1024
_VMEM_BUDGET = 32 * _MIB   # per-step working-set target (v7x has 64 MiB phys)
_VMEM_CAP = 48 * _MIB      # never request more scoped VMEM than this


def _tile(dim, preferred, quantum):
    """Largest tile <= `preferred` that divides `dim` and is a multiple of
    `quantum`; falls back to the full dim (always a legal block size)."""
    if dim <= preferred:
        return dim
    t = (preferred // quantum) * quantum
    while t >= quantum:
        if dim % t == 0:
            return t
        t -= quantum
    # TODO(synk): support masked partial tiles for awkward dims; full-dim
    # fallback is a VMEM hazard for very large, prime-ish dims.
    return dim


def _choose_tile(dim, preferred, est_fn, budget):
    """Largest divisor-tile (multiple of 8) <= preferred whose estimated VMEM
    footprint fits `budget`; otherwise the smallest divisor-tile."""
    cands = sorted((t for t in range(8, dim + 1, 8) if dim % t == 0),
                   reverse=True)
    if not cands:
        return dim
    for t in cands:
        if t <= preferred and est_fn(t) <= budget:
            return t
    return cands[-1]


def _vmem_limit(est_bytes):
    return int(min(max(2 * est_bytes, 16 * _MIB), _VMEM_CAP))


# ----------------------------------------------------------------------------
# Kernel 1: tiled linear projection  y = x @ W + b
#   grid = (M/tm, N/tn, K/tk); K innermost reduction with a VMEM f32
#   accumulator (pl.when init/finalize).  M/N axes "parallel" (pipelined +
#   megacore-sharded); VMEM stays bounded regardless of M = B*L or d_model.
# ----------------------------------------------------------------------------
def linear_kernel(x_ref, w_ref, b_ref, o_ref, acc_ref):
    @pl.when(pl.program_id(2) == 0)
    def _init():
        acc_ref[...] = jnp.zeros_like(acc_ref)

    acc_ref[...] += jnp.dot(x_ref[...], w_ref[...],
                            preferred_element_type=jnp.float32)

    @pl.when(pl.program_id(2) == pl.num_programs(2) - 1)
    def _finalize():
        o_ref[...] = (acc_ref[...] + b_ref[...]).astype(o_ref.dtype)


def linear(x2d, w, b, *, tm=512, tn=512, tk=512):
    M, K = x2d.shape
    _, N = w.shape
    tm = _tile(M, tm, 8)
    tn = _tile(N, tn, 128)
    tk = _tile(K, tk, 128)
    grid = (M // tm, N // tn, K // tk)
    # double-buffered blocks + f32 accumulator scratch
    est = 4 * (2 * (tm * tk + tk * tn + tn + tm * tn) + tm * tn)
    return pl.pallas_call(
        linear_kernel,
        grid=grid,
        out_shape=jax.ShapeDtypeStruct((M, N), jnp.float32),
        in_specs=[
            pl.BlockSpec((tm, tk), lambda i, j, k: (i, k)),
            pl.BlockSpec((tk, tn), lambda i, j, k: (k, j)),
            pl.BlockSpec((1, tn), lambda i, j, k: (0, j)),
        ],
        out_specs=pl.BlockSpec((tm, tn), lambda i, j, k: (i, j)),
        scratch_shapes=[pltpu.VMEM((tm, tn), jnp.float32)],
        compiler_params=pltpu.CompilerParams(
            dimension_semantics=("parallel", "parallel", "arbitrary"),
            vmem_limit_bytes=_vmem_limit(est)),
    )(x2d, w, b)


# ----------------------------------------------------------------------------
# Kernel 2a: attention WITH the full [B,H,L,L] probability output.
#   grid = (B, L/tq): one batch / one query tile per step, all heads handled
#   per step (lane-packed).  Context is accumulated into a lane-dense VMEM
#   scratch slab and stored once.  attn is cast to attn_ref.dtype (f32 or
#   bf16) on store — ctx math stays f32.
# ----------------------------------------------------------------------------
def mha_attn_kernel(qp_ref, kp_ref, vp_ref, ctx_ref, attn_ref, ctx_acc, *,
                    n_heads, d_k, d_v):
    q = qp_ref[0]          # (TQ, H*d_k)  (1/sqrt(d_k) already folded into W_q)
    k = kp_ref[0]          # (L,  H*d_k)
    v = vp_ref[0]          # (L,  H*d_v)
    for h in range(n_heads):                                  # static unroll
        qh = q[:, h * d_k:(h + 1) * d_k]
        kh = k[:, h * d_k:(h + 1) * d_k]
        vh = v[:, h * d_v:(h + 1) * d_v]
        # contract last dims directly (trans-B semantics, no in-kernel k.T).
        # TODO(synk): if the Mosaic dump shows a per-step vxpose of the K tile,
        # hoist K into a once-per-batch VMEM scratch (qi axis 'arbitrary').
        s = lax.dot_general(qh, kh, (((1,), (1,)), ((), ())),
                            preferred_element_type=jnp.float32)
        s = s - jnp.max(s, axis=-1, keepdims=True)
        e = jnp.exp(s)
        a = e * pl.reciprocal(jnp.sum(e, axis=-1, keepdims=True), approx=False)
        attn_ref[0, h] = a.astype(attn_ref.dtype)
        # write each head's result into the lane-dense scratch slab: per-head
        # temporaries die each iteration (no H live partials, no concatenate),
        # and the final store is one lane-dense (TQ, H*d_v) vst.
        ctx_acc[:, h * d_v:(h + 1) * d_v] = jnp.dot(
            a, vh, preferred_element_type=jnp.float32)
    ctx_ref[0] = ctx_acc[...]


def sdpa_full(q_p, k_p, v_p, *, n_heads, d_k, d_v, attn_dtype=jnp.float32,
              tq=128):
    B, L, _ = q_p.shape
    hdk, hdv = n_heads * d_k, n_heads * d_v
    attn_bpe = jnp.dtype(attn_dtype).itemsize

    def est(t):  # double-buffered blocks + ctx scratch + score/exp temporaries
        blk = (4 * (t * hdk + L * hdk + L * hdv + t * hdv)
               + attn_bpe * n_heads * t * L)
        return 2 * blk + 4 * t * hdv + 4 * 4 * t * L

    tq = _choose_tile(L, tq, est, _VMEM_BUDGET)
    grid = (B, L // tq)
    return pl.pallas_call(
        partial(mha_attn_kernel, n_heads=n_heads, d_k=d_k, d_v=d_v),
        grid=grid,
        out_shape=(
            jax.ShapeDtypeStruct((B, L, hdv), jnp.float32),
            jax.ShapeDtypeStruct((B, n_heads, L, L), attn_dtype),
        ),
        in_specs=[
            pl.BlockSpec((1, tq, hdk), lambda b, qi: (b, qi, 0)),
            pl.BlockSpec((1, L, hdk), lambda b, qi: (b, 0, 0)),
            pl.BlockSpec((1, L, hdv), lambda b, qi: (b, 0, 0)),
        ],
        out_specs=(
            pl.BlockSpec((1, tq, hdv), lambda b, qi: (b, qi, 0)),
            pl.BlockSpec((1, n_heads, tq, L), lambda b, qi: (b, 0, qi, 0)),
        ),
        scratch_shapes=[pltpu.VMEM((tq, hdv), jnp.float32)],
        compiler_params=pltpu.CompilerParams(
            dimension_semantics=("parallel", "parallel"),
            vmem_limit_bytes=_vmem_limit(est(tq))),
    )(q_p, k_p, v_p)


# ----------------------------------------------------------------------------
# Kernel 2b: context-only flash-style attention (online softmax, KV-tiled).
#   grid = (B, L/tq, L/tkv); kv axis innermost/"arbitrary" with m/l/acc VMEM
#   carry.  Removes the O(L^2) attn writeback entirely and bounds the resident
#   set to (tq, tkv) — safe for v7x's 64 MiB VMEM at long L.
# ----------------------------------------------------------------------------
def mha_flash_kernel(qp_ref, kp_ref, vp_ref, ctx_ref, m_ref, l_ref, acc_ref,
                     *, n_heads, d_k, d_v):
    ki = pl.program_id(2)

    @pl.when(ki == 0)
    def _init():
        m_ref[...] = jnp.full_like(m_ref, -jnp.inf)
        l_ref[...] = jnp.zeros_like(l_ref)
        acc_ref[...] = jnp.zeros_like(acc_ref)

    q = qp_ref[0]          # (TQ,  H*d_k)
    k = kp_ref[0]          # (TKV, H*d_k)
    v = vp_ref[0]          # (TKV, H*d_v)
    for h in range(n_heads):                                  # static unroll
        qh = q[:, h * d_k:(h + 1) * d_k]
        kh = k[:, h * d_k:(h + 1) * d_k]
        vh = v[:, h * d_v:(h + 1) * d_v]
        s = lax.dot_general(qh, kh, (((1,), (1,)), ((), ())),
                            preferred_element_type=jnp.float32)
        m_prev = m_ref[h]                                     # (TQ, 1)
        m_new = jnp.maximum(m_prev, jnp.max(s, axis=-1, keepdims=True))
        alpha = jnp.exp(m_prev - m_new)
        p = jnp.exp(s - m_new)
        l_ref[h] = alpha * l_ref[h] + jnp.sum(p, axis=-1, keepdims=True)
        sl = slice(h * d_v, (h + 1) * d_v)
        acc_ref[:, sl] = alpha * acc_ref[:, sl] + jnp.dot(
            p, vh, preferred_element_type=jnp.float32)
        m_ref[h] = m_new

    @pl.when(ki == pl.num_programs(2) - 1)
    def _finalize():
        for h in range(n_heads):
            sl = slice(h * d_v, (h + 1) * d_v)
            acc_ref[:, sl] = acc_ref[:, sl] * pl.reciprocal(l_ref[h],
                                                            approx=False)
        ctx_ref[0] = acc_ref[...]


def sdpa_flash(q_p, k_p, v_p, *, n_heads, d_k, d_v, tq=128, tkv=128):
    B, L, _ = q_p.shape
    hdk, hdv = n_heads * d_k, n_heads * d_v
    tkv = _tile(L, tkv, 128)

    def est(t):  # double-buffered blocks + m/l/acc scratch + temporaries
        blk = 4 * (t * hdk + tkv * hdk + tkv * hdv + t * hdv)
        scr = 4 * (t * hdv + 2 * n_heads * t * 128)
        return 2 * blk + scr + 4 * 4 * t * tkv

    tq = _choose_tile(L, tq, est, _VMEM_BUDGET)
    grid = (B, L // tq, L // tkv)
    return pl.pallas_call(
        partial(mha_flash_kernel, n_heads=n_heads, d_k=d_k, d_v=d_v),
        grid=grid,
        out_shape=jax.ShapeDtypeStruct((B, L, hdv), jnp.float32),
        in_specs=[
            pl.BlockSpec((1, tq, hdk), lambda b, qi, ki: (b, qi, 0)),
            pl.BlockSpec((1, tkv, hdk), lambda b, qi, ki: (b, ki, 0)),
            pl.BlockSpec((1, tkv, hdv), lambda b, qi, ki: (b, ki, 0)),
        ],
        out_specs=pl.BlockSpec((1, tq, hdv), lambda b, qi, ki: (b, qi, 0)),
        scratch_shapes=[pltpu.VMEM((n_heads, tq, 1), jnp.float32),   # m
                        pltpu.VMEM((n_heads, tq, 1), jnp.float32),   # l
                        pltpu.VMEM((tq, hdv), jnp.float32)],          # acc
        compiler_params=pltpu.CompilerParams(
            dimension_semantics=("parallel", "parallel", "arbitrary"),
            vmem_limit_bytes=_vmem_limit(est(tq))),
    )(q_p, k_p, v_p)


# ----------------------------------------------------------------------------
# Full _MultiHeadAttention forward (attn_mask=None, dropout=None)
# ----------------------------------------------------------------------------
def multi_head_attention(params, q, k, v, attn_mask=None, *,
                         return_attn=True, attn_dtype=jnp.float32):
    # TODO(synk): attn_mask masking and attention dropout are not implemented
    # (both are None/disabled in this configuration of the module).
    assert attn_mask is None
    B, L, d_model = q.shape
    H, d_k, d_v = params["n_heads"], params["d_k"], params["d_v"]

    if q is k and k is v and "w_qkv" in params:
        # Self-attention fast path: read x from HBM once through a single
        # fused projection (W_q|W_k|W_v concatenated along N at init time).
        qkv = linear(q.reshape(B * L, d_model), params["w_qkv"],
                     params["b_qkv"])
        q_p = qkv[:, :H * d_k]
        k_p = qkv[:, H * d_k:2 * H * d_k]
        v_p = qkv[:, 2 * H * d_k:]
    else:
        q_p = linear(q.reshape(B * L, d_model), params["w_q"], params["b_q"])
        k_p = linear(k.reshape(B * L, d_model), params["w_k"], params["b_k"])
        v_p = linear(v.reshape(B * L, d_model), params["w_v"], params["b_v"])

    # Free reshapes back to [B, L, H*d]; heads stay packed in the lane dim so
    # the attention kernels need no XLA transposes on either side.
    q_p = q_p.reshape(B, L, H * d_k)
    k_p = k_p.reshape(B, L, H * d_k)
    v_p = v_p.reshape(B, L, H * d_v)

    if return_attn:
        return sdpa_full(q_p, k_p, v_p, n_heads=H, d_k=d_k, d_v=d_v,
                         attn_dtype=attn_dtype)
    ctx = sdpa_flash(q_p, k_p, v_p, n_heads=H, d_k=d_k, d_v=d_v)
    return ctx, None


# ----------------------------------------------------------------------------
# Deterministic parameter init (xavier_normal weights, zero biases) + reference
# ----------------------------------------------------------------------------
def xavier_normal(key, fan_in, fan_out):
    std = math.sqrt(2.0 / (fan_in + fan_out))
    # stored as [in, out] so kernels do x @ W directly (== torch x @ W_torch.T)
    return jax.random.normal(key, (fan_in, fan_out), jnp.float32) * std


def init_params(key, d_model, d_k, d_v, n_heads):
    ks = jax.random.split(key, 3)
    scale = 1.0 / math.sqrt(d_k)
    # One-time fold of the 1/sqrt(d_k) score scale into W_q/b_q: identical math
    # to the torch module's runtime `scores / sqrt(d_k)` (scale commutes), but
    # removes a per-head VPU multiply from the kernel's inner loop.
    w_q = xavier_normal(ks[0], d_model, d_k * n_heads) * scale
    b_q = jnp.zeros((1, d_k * n_heads), jnp.float32) * scale
    w_k = xavier_normal(ks[1], d_model, d_k * n_heads)
    b_k = jnp.zeros((1, d_k * n_heads), jnp.float32)
    w_v = xavier_normal(ks[2], d_model, d_v * n_heads)
    b_v = jnp.zeros((1, d_v * n_heads), jnp.float32)
    return {
        "n_heads": n_heads, "d_k": d_k, "d_v": d_v,
        "w_q": w_q, "b_q": b_q, "w_k": w_k, "b_k": b_k, "w_v": w_v, "b_v": b_v,
        # pre-fused projection for the self-attention (q is k is v) fast path
        "w_qkv": jnp.concatenate([w_q, w_k, w_v], axis=1),
        "b_qkv": jnp.concatenate([b_q, b_k, b_v], axis=1),
    }


def reference(params, q, k, v):
    B, L, d_model = q.shape
    H, d_k, d_v = params["n_heads"], params["d_k"], params["d_v"]
    hi = lax.Precision.HIGHEST

    def proj(x, w, b):
        return jnp.einsum("bld,dn->bln", x, w, precision=hi) + b

    q_s = proj(q, params["w_q"], params["b_q"]).reshape(B, L, H, d_k).transpose(0, 2, 1, 3)
    k_s = proj(k, params["w_k"], params["b_k"]).reshape(B, L, H, d_k).transpose(0, 2, 1, 3)
    v_s = proj(v, params["w_v"], params["b_v"]).reshape(B, L, H, d_v).transpose(0, 2, 1, 3)
    # NOTE: no /sqrt(d_k) here — the scale is already folded into w_q/b_q.
    scores = jnp.einsum("bhqd,bhkd->bhqk", q_s, k_s, precision=hi)
    attn = jax.nn.softmax(scores, axis=-1)
    ctx = jnp.einsum("bhqk,bhkd->bhqd", attn, v_s, precision=hi)
    ctx = ctx.transpose(0, 2, 1, 3).reshape(B, L, H * d_v)
    return ctx, attn


if __name__ == "__main__":
    B, L, d_model, d_k, d_v, n_heads = 2, 256, 32, 16, 16, 4
    key = jax.random.PRNGKey(0)
    kp, kq, kk, kv = jax.random.split(key, 4)
    params = init_params(kp, d_model, d_k, d_v, n_heads)
    q = jax.random.normal(kq, (B, L, d_model), jnp.float32)
    k = jax.random.normal(kk, (B, L, d_model), jnp.float32)
    v = jax.random.normal(kv, (B, L, d_model), jnp.float32)

    ref_ctx, ref_attn = reference(params, q, k, v)

    # 1) module-faithful path: separate projections, full f32 attn matrix.
    context, attn = multi_head_attention(params, q, k, v, attn_mask=None)
    jax.block_until_ready((context, attn))
    assert jnp.allclose(context, ref_ctx, atol=1e-4, rtol=1e-4), \
        float(jnp.max(jnp.abs(context - ref_ctx)))
    assert jnp.allclose(attn, ref_attn, atol=1e-4, rtol=1e-4), \
        float(jnp.max(jnp.abs(attn - ref_attn)))

    # 2) bf16 attn-probability writeback (halves the dominant O(L^2) HBM
    #    traffic); context math stays f32.
    ctx_bf, attn_bf = multi_head_attention(params, q, k, v, attn_mask=None,
                                           attn_dtype=jnp.bfloat16)
    jax.block_until_ready((ctx_bf, attn_bf))
    assert jnp.allclose(ctx_bf, ref_ctx, atol=1e-4, rtol=1e-4)
    assert jnp.allclose(attn_bf.astype(jnp.float32), ref_attn, atol=1e-2)

    # 3) context-only flash path + fused QKV projection (self-attention).
    ref_ctx_sa, _ = reference(params, q, q, q)
    ctx_sa, none_attn = multi_head_attention(params, q, q, q, attn_mask=None,
                                             return_attn=False)
    jax.block_until_ready(ctx_sa)
    assert none_attn is None
    assert jnp.allclose(ctx_sa, ref_ctx_sa, atol=1e-4, rtol=1e-4), \
        float(jnp.max(jnp.abs(ctx_sa - ref_ctx_sa)))

    print("KERNEL_OK")
</pallas_src>

<mosaic_0001>
module attributes {stable_mosaic.version = 11 : i64} {
  func.func @linear_kernel(%arg0: i32, %arg1: i32, %arg2: i32, %arg3: memref<512x32xf32, #tpu.memory_space<vmem>>, %arg4: memref<32x64xf32, #tpu.memory_space<vmem>>, %arg5: memref<1x64xf32, #tpu.memory_space<vmem>>, %arg6: memref<512x64xf32, #tpu.memory_space<vmem>>, %arg7: memref<512x64xf32, #tpu.memory_space<vmem>>) attributes {dimension_semantics = [#tpu.dimension_semantics<parallel>, #tpu.dimension_semantics<parallel>, #tpu.dimension_semantics<arbitrary>], iteration_bounds = array<i64: 1, 1, 1>, scalar_prefetch = 0 : i64, scratch_operands = 1 : i64, tpu.core_type = #tpu.core_type<tc>, window_params = [{transform_indices = @transform_0, window_bounds = array<i64: 512, 32>}, {transform_indices = @transform_1, window_bounds = array<i64: 32, 64>}, {transform_indices = @transform_2, window_bounds = array<i64: 1, 64>}, {transform_indices = @transform_3, window_bounds = array<i64: 512, 64>}]} {
    %c0_i32 = arith.constant 0 : i32
    %0 = arith.cmpi eq, %arg2, %c0_i32 : i32
    %1 = arith.extui %0 : i1 to i32
    %c0_i32_0 = arith.constant 0 : i32
    %2 = arith.cmpi ne, %1, %c0_i32_0 : i32
    scf.if %2 {
      %cst_10 = arith.constant 0.000000e+00 : f32
      %12 = vector.broadcast %cst_10 : f32 to vector<512x64xf32>
      %c0_11 = arith.constant 0 : index
      %c0_12 = arith.constant 0 : index
      %13 = vector.load %arg7[%c0_11, %c0_12] : memref<512x64xf32, #tpu.memory_space<vmem>>, vector<512x64xf32>
      tpu.vector_store %arg7[%c0_11, %c0_12], %12 {strides = array<i32>} : memref<512x64xf32, #tpu.memory_space<vmem>>, vector<512x64xf32>,
    } else {
    }
    %c0 = arith.constant 0 : index
    %c0_1 = arith.constant 0 : index
    %3 = vector.load %arg7[%c0, %c0_1] : memref<512x64xf32, #tpu.memory_space<vmem>>, vector<512x64xf32>
    %c0_2 = arith.constant 0 : index
    %c0_3 = arith.constant 0 : index
    %4 = vector.load %arg3[%c0_2, %c0_3] : memref<512x32xf32, #tpu.memory_space<vmem>>, vector<512x32xf32>
    %c0_4 = arith.constant 0 : index
    %c0_5 = arith.constant 0 : index
    %5 = vector.load %arg4[%c0_4, %c0_5] : memref<32x64xf32, #tpu.memory_space<vmem>>, vector<32x64xf32>
    %cst = arith.constant dense<0.000000e+00> : vector<512x64xf32>
    %6 = tpu.matmul %4, %5, %cst {dimension_numbers = #tpu.dot_dimension_numbers<[1], [0], [0], [1], [0, 0, 1, 1], [], []>} : vector<512x32xf32>, vector<32x64xf32>, vector<512x64xf32> -> vector<512x64xf32>
    %7 = arith.addf %3, %6 : vector<512x64xf32>
    %c0_6 = arith.constant 0 : index
    %c0_7 = arith.constant 0 : index
    %8 = vector.load %arg7[%c0_6, %c0_7] : memref<512x64xf32, #tpu.memory_space<vmem>>, vector<512x64xf32>
    tpu.vector_store %arg7[%c0_6, %c0_7], %7 {strides = array<i32>} : memref<512x64xf32, #tpu.memory_space<vmem>>, vector<512x64xf32>,
    %c0_i32_8 = arith.constant 0 : i32
    %9 = arith.cmpi eq, %arg2, %c0_i32_8 : i32
    %10 = arith.extui %9 : i1 to i32
    %c0_i32_9 = arith.constant 0 : i32
    %11 = arith.cmpi ne, %10, %c0_i32_9 : i32
    scf.if %11 {
      %c0_10 = arith.constant 0 : index
      %c0_11 = arith.constant 0 : index
      %12 = vector.load %arg7[%c0_10, %c0_11] : memref<512x64xf32, #tpu.memory_space<vmem>>, vector<512x64xf32>
      %c0_12 = arith.constant 0 : index
      %c0_13 = arith.constant 0 : index
      %13 = vector.load %arg5[%c0_12, %c0_13] : memref<1x64xf32, #tpu.memory_space<vmem>>, vector<1x64xf32>
      %14 = vector.broadcast %13 : vector<1x64xf32> to vector<512x64xf32>
      %15 = arith.addf %12, %14 : vector<512x64xf32>
      %c0_14 = arith.constant 0 : index
      %c0_15 = arith.constant 0 : index
      %16 = vector.load %arg6[%c0_14, %c0_15] : memref<512x64xf32, #tpu.memory_space<vmem>>, vector<512x64xf32>
      tpu.vector_store %arg6[%c0_14, %c0_15], %15 {strides = array<i32>} : memref<512x64xf32, #tpu.memory_space<vmem>>, vector<512x64xf32>,
    } else {
    }
    return
  }
  func.func @transform_0(%arg0: i32, %arg1: i32, %arg2: i32) -> (i32, i32) {
    %c0_i32 = arith.constant 0 : i32
    return %arg0, %arg2 : i32, i32
  }
  func.func @transform_1(%arg0: i32, %arg1: i32, %arg2: i32) -> (i32, i32) {
    %c0_i32 = arith.constant 0 : i32
    return %arg2, %arg1 : i32, i32
  }
  func.func @transform_2(%arg0: i32, %arg1: i32, %arg2: i32) -> (i32, i32) {
    %c0_i32 = arith.constant 0 : i32
    %c0_i32_0 = arith.constant 0 : i32
    return %c0_i32, %arg1 : i32, i32
  }
  func.func @transform_3(%arg0: i32, %arg1: i32, %arg2: i32) -> (i32, i32) {
    %c0_i32 = arith.constant 0 : i32
    return %arg0, %arg1 : i32, i32
  }
}

</mosaic_0001>

<llo_original>
// kernel: tpu_custom_call.1
$region0: #{tpu_custom_call.1}
  #allocation0 [shape = 'u32[]', space=smem, size = 0x4, offset = 0x4, fixed_abs, tag = 'smem constant byte address 0x4 - core index']
  #allocation1 [shape = 'u32[144,128]{1,0:T(1,128)}', space=vmem, size = 0x12000, scoped, tag = 'internal scratch']
  #allocation2 [shape = 'f32[512,64]{1,0:T(8,128)}', space=vmem, size = 0x40000, scoped, tag = 'scratch operand']
  %s0 = inlined_call_operand.vmem [shape: f32[512,32], index: 0, kind: input, shape index: {}]
  %s1 = inlined_call_operand.vmem [shape: f32[32,64], index: 1, kind: input, shape index: {}]
  %s2 = inlined_call_operand.vmem [shape: f32[1,64], index: 2, kind: input, shape index: {}]
  %s3 = inlined_call_operand.vmem [shape: f32[512,64], index: 3, kind: output, shape index: {}]
  %s4 = sld [smem:[#allocation0]]
  $region30: #{tpu_custom_call.1} parent=0
    _
  %s6 = ssub.s32 1, %s4
  %s7 = scalar_select 0, %s6, %s4
  // Predicated region
  $region2: #{tpu_custom_call.1} parent=0 // pred_check
    _
  $region3: #{tpu_custom_call.1} parent=0 // pred_check_branch
    %9 = sbr.rel (0) target = $region5
  $region4: #{tpu_custom_call.1} parent=0 // pred_region
    _
  $region5: #{tpu_custom_call.1} parent=0 // pred_fallthru
    _
  // Predicated region
  $region6: #{tpu_custom_call.1} parent=0 // pred_check
    _
  $region7: #{tpu_custom_call.1} parent=0 // pred_check_branch
    %11 = sbr.rel (0) target = $region9
  $region8: #{tpu_custom_call.1} parent=0 // pred_region
    _
  $region9: #{tpu_custom_call.1} parent=0 // pred_fallthru
    _
  // Predicated region
  $region10: #{tpu_custom_call.1} parent=0 // pred_check
    _
  $region11: #{tpu_custom_call.1} parent=0 // pred_check_branch
    %13 = sbr.rel (0) target = $region13
  $region12: #{tpu_custom_call.1} parent=0 // pred_region
    _
  $region13: #{tpu_custom_call.1} parent=0 // pred_fallthru
    _
  %p14 = scmp.eq.s32.totalorder 0, 0
  // Predicated region
  $region14: #{tpu_custom_call.1} parent=0 // pred_check
    %p15 = pneg %p14
  $region15: #{tpu_custom_call.1} parent=0 // pred_check_branch
    %17 = sbr.rel (%p15) target = $region17
  $region16: #{tpu_custom_call.1} parent=0 // pred_region
    %vm18 = vcmask 523264
    %19 = vst.msk [vmem:[#allocation2] sm:$0xff] %vm18, 0.0
    %20 = vst.msk [vmem:[#allocation2 + $0x8] sm:$0xff] %vm18, 0.0
    %21 = vst.msk [vmem:[#allocation2 + $0x10] sm:$0xff] %vm18, 0.0
    %22 = vst.msk [vmem:[#allocation2 + $0x18] sm:$0xff] %vm18, 0.0
    %23 = vst.msk [vmem:[#allocation2 + $0x20] sm:$0xff] %vm18, 0.0
    %24 = vst.msk [vmem:[#allocation2 + $0x28] sm:$0xff] %vm18, 0.0
    %25 = vst.msk [vmem:[#allocation2 + $0x30] sm:$0xff] %vm18, 0.0
    %26 = vst.msk [vmem:[#allocation2 + $0x38] sm:$0xff] %vm18, 0.0
    %27 = vst.msk [vmem:[#allocation2 + $0x40] sm:$0xff] %vm18, 0.0
    %28 = vst.msk [vmem:[#allocation2 + $0x48] sm:$0xff] %vm18, 0.0
    %29 = vst.msk [vmem:[#allocation2 + $0x50] sm:$0xff] %vm18, 0.0
    %30 = vst.msk [vmem:[#allocation2 + $0x58] sm:$0xff] %vm18, 0.0
    %31 = vst.msk [vmem:[#allocation2 + $0x60] sm:$0xff] %vm18, 0.0
    %32 = vst.msk [vmem:[#allocation2 + $0x68] sm:$0xff] %vm18, 0.0
    %33 = vst.msk [vmem:[#allocation2 + $0x70] sm:$0xff] %vm18, 0.0
    %34 = vst.msk [vmem:[#allocation2 + $0x78] sm:$0xff] %vm18, 0.0
    %35 = vst.msk [vmem:[#allocation2 + $0x80] sm:$0xff] %vm18, 0.0
    %36 = vst.msk [vmem:[#allocation2 + $0x88] sm:$0xff] %vm18, 0.0
    %37 = vst.msk [vmem:[#allocation2 + $0x90] sm:$0xff] %vm18, 0.0
    %38 = vst.msk [vmem:[#allocation2 + $0x98] sm:$0xff] %vm18, 0.0
    %39 = vst.msk [vmem:[#allocation2 + $0xa0] sm:$0xff] %vm18, 0.0
    %40 = vst.msk [vmem:[#allocation2 + $0xa8] sm:$0xff] %vm18, 0.0
    %41 = vst.msk [vmem:[#allocation2 + $0xb0] sm:$0xff] %vm18, 0.0
    %42 = vst.msk [vmem:[#allocation2 + $0xb8] sm:$0xff] %vm18, 0.0
    %43 = vst.msk [vmem:[#allocation2 + $0xc0] sm:$0xff] %vm18, 0.0
    %44 = vst.msk [vmem:[#allocation2 + $0xc8] sm:$0xff] %vm18, 0.0
    %45 = vst.msk [vmem:[#allocation2 + $0xd0] sm:$0xff] %vm18, 0.0
    %46 = vst.msk [vmem:[#allocation2 + $0xd8] sm:$0xff] %vm18, 0.0
    %47 = vst.msk [vmem:[#allocation2 + $0xe0] sm:$0xff] %vm18, 0.0
    %48 = vst.msk [vmem:[#allocation2 + $0xe8] sm:$0xff] %vm18, 0.0
    %49 = vst.msk [vmem:[#allocation2 + $0xf0] sm:$0xff] %vm18, 0.0
    %50 = vst.msk [vmem:[#allocation2 + $0xf8] sm:$0xff] %vm18, 0.0
    %51 = vst.msk [vmem:[#allocation2 + $0x100] sm:$0xff] %vm18, 0.0
    %52 = vst.msk [vmem:[#allocation2 + $0x108] sm:$0xff] %vm18, 0.0
    %53 = vst.msk [vmem:[#allocation2 + $0x110] sm:$0xff] %vm18, 0.0
    %54 = vst.msk [vmem:[#allocation2 + $0x118] sm:$0xff] %vm18, 0.0
    %55 = vst.msk [vmem:[#allocation2 + $0x120] sm:$0xff] %vm18, 0.0
    %56 = vst.msk [vmem:[#allocation2 + $0x128] sm:$0xff] %vm18, 0.0
    %57 = vst.msk [vmem:[#allocation2 + $0x130] sm:$0xff] %vm18, 0.0
    %58 = vst.msk [vmem:[#allocation2 + $0x138] sm:$0xff] %vm18, 0.0
    %59 = vst.msk [vmem:[#allocation2 + $0x140] sm:$0xff] %vm18, 0.0
    %60 = vst.msk [vmem:[#allocation2 + $0x148] sm:$0xff] %vm18, 0.0
    %61 = vst.msk [vmem:[#allocation2 + $0x150] sm:$0xff] %vm18, 0.0
    %62 = vst.msk [vmem:[#allocation2 + $0x158] sm:$0xff] %vm18, 0.0
    %63 = vst.msk [vmem:[#allocation2 + $0x160] sm:$0xff] %vm18, 0.0
    %64 = vst.msk [vmem:[#allocation2 + $0x168] sm:$0xff] %vm18, 0.0
    %65 = vst.msk [vmem:[#allocation2 + $0x170] sm:$0xff] %vm18, 0.0
    %66 = vst.msk [vmem:[#allocation2 + $0x178] sm:$0xff] %vm18, 0.0
    %67 = vst.msk [vmem:[#allocation2 + $0x180] sm:$0xff] %vm18, 0.0
    %68 = vst.msk [vmem:[#allocation2 + $0x188] sm:$0xff] %vm18, 0.0
    %69 = vst.msk [vmem:[#allocation2 + $0x190] sm:$0xff] %vm18, 0.0
    %70 = vst.msk [vmem:[#allocation2 + $0x198] sm:$0xff] %vm18, 0.0
    %71 = vst.msk [vmem:[#allocation2 + $0x1a0] sm:$0xff] %vm18, 0.0
    %72 = vst.msk [vmem:[#allocation2 + $0x1a8] sm:$0xff] %vm18, 0.0
    %73 = vst.msk [vmem:[#allocation2 + $0x1b0] sm:$0xff] %vm18, 0.0
    %74 = vst.msk [vmem:[#allocation2 + $0x1b8] sm:$0xff] %vm18, 0.0
    %75 = vst.msk [vmem:[#allocation2 + $0x1c0] sm:$0xff] %vm18, 0.0
    %76 = vst.msk [vmem:[#allocation2 + $0x1c8] sm:$0xff] %vm18, 0.0
    %77 = vst.msk [vmem:[#allocation2 + $0x1d0] sm:$0xff] %vm18, 0.0
    %78 = vst.msk [vmem:[#allocation2 + $0x1d8] sm:$0xff] %vm18, 0.0
    %79 = vst.msk [vmem:[#allocation2 + $0x1e0] sm:$0xff] %vm18, 0.0
    %80 = vst.msk [vmem:[#allocation2 + $0x1e8] sm:$0xff] %vm18, 0.0
    %81 = vst.msk [vmem:[#allocation2 + $0x1f0] sm:$0xff] %vm18, 0.0
    %82 = vst.msk [vmem:[#allocation2 + $0x1f8] sm:$0xff] %vm18, 0.0
  $region17: #{tpu_custom_call.1} parent=0 // pred_fallthru
    _
  %v83 = vld [vmem:[#allocation2] sm:$0xff]
  %v84 = vld [vmem:[#allocation2 + $0x8] sm:$0xff]
  %v85 = vld [vmem:[#allocation2 + $0x10] sm:$0xff]
  %v86 = vld [vmem:[#allocation2 + $0x18] sm:$0xff]
  %v87 = vld [vmem:[#allocation2 + $0x20] sm:$0xff]
  %v88 = vld [vmem:[#allocation2 + $0x28] sm:$0xff]
  %v89 = vld [vmem:[#allocation2 + $0x30] sm:$0xff]
  %v90 = vld [vmem:[#allocation2 + $0x38] sm:$0xff]
  %v91 = vld [vmem:[#allocation2 + $0x40] sm:$0xff]
  %v92 = vld [vmem:[#allocation2 + $0x48] sm:$0xff]
  %v93 = vld [vmem:[#allocation2 + $0x50] sm:$0xff]
  %v94 = vld [vmem:[#allocation2 + $0x58] sm:$0xff]
  %v95 = vld [vmem:[#allocation2 + $0x60] sm:$0xff]
  %v96 = vld [vmem:[#allocation2 + $0x68] sm:$0xff]
  %v97 = vld [vmem:[#allocation2 + $0x70] sm:$0xff]
  %v98 = vld [vmem:[#allocation2 + $0x78] sm:$0xff]
  %v99 = vld [vmem:[#allocation2 + $0x80] sm:$0xff]
  %v100 = vld [vmem:[#allocation2 + $0x88] sm:$0xff]
  %v101 = vld [vmem:[#allocation2 + $0x90] sm:$0xff]
  %v102 = vld [vmem:[#allocation2 + $0x98] sm:$0xff]
  %v103 = vld [vmem:[#allocation2 + $0xa0] sm:$0xff]
  %v104 = vld [vmem:[#allocation2 + $0xa8] sm:$0xff]
  %v105 = vld [vmem:[#allocation2 + $0xb0] sm:$0xff]
  %v106 = vld [vmem:[#allocation2 + $0xb8] sm:$0xff]
  %v107 = vld [vmem:[#allocation2 + $0xc0] sm:$0xff]
  %v108 = vld [vmem:[#allocation2 + $0xc8] sm:$0xff]
  %v109 = vld [vmem:[#allocation2 + $0xd0] sm:$0xff]
  %v110 = vld [vmem:[#allocation2 + $0xd8] sm:$0xff]
  %v111 = vld [vmem:[#allocation2 + $0xe0] sm:$0xff]
  %v112 = vld [vmem:[#allocation2 + $0xe8] sm:$0xff]
  %v113 = vld [vmem:[#allocation2 + $0xf0] sm:$0xff]
  %v114 = vld [vmem:[#allocation2 + $0xf8] sm:$0xff]
  %v115 = vld [vmem:[#allocation2 + $0x100] sm:$0xff]
  %v116 = vld [vmem:[#allocation2 + $0x108] sm:$0xff]
  %v117 = vld [vmem:[#allocation2 + $0x110] sm:$0xff]
  %v118 = vld [vmem:[#allocation2 + $0x118] sm:$0xff]
  %v119 = vld [vmem:[#allocation2 + $0x120] sm:$0xff]
  %v120 = vld [vmem:[#allocation2 + $0x128] sm:$0xff]
  %v121 = vld [vmem:[#allocation2 + $0x130] sm:$0xff]
  %v122 = vld [vmem:[#allocation2 + $0x138] sm:$0xff]
  %v123 = vld [vmem:[#allocation2 + $0x140] sm:$0xff]
  %v124 = vld [vmem:[#allocation2 + $0x148] sm:$0xff]
  %v125 = vld [vmem:[#allocation2 + $0x150] sm:$0xff]
  %v126 = vld [vmem:[#allocation2 + $0x158] sm:$0xff]
  %v127 = vld [vmem:[#allocation2 + $0x160] sm:$0xff]
  %v128 = vld [vmem:[#allocation2 + $0x168] sm:$0xff]
  %v129 = vld [vmem:[#allocation2 + $0x170] sm:$0xff]
  %v130 = vld [vmem:[#allocation2 + $0x178] sm:$0xff]
  %v131 = vld [vmem:[#allocation2 + $0x180] sm:$0xff]
  %v132 = vld [vmem:[#allocation2 + $0x188] sm:$0xff]
  %v133 = vld [vmem:[#allocation2 + $0x190] sm:$0xff]
  %v134 = vld [vmem:[#allocation2 + $0x198] sm:$0xff]
  %v135 = vld [vmem:[#allocation2 + $0x1a0] sm:$0xff]
  %v136 = vld [vmem:[#allocation2 + $0x1a8] sm:$0xff]
  %v137 = vld [vmem:[#allocation2 + $0x1b0] sm:$0xff]
  %v138 = vld [vmem:[#allocation2 + $0x1b8] sm:$0xff]
  %v139 = vld [vmem:[#allocation2 + $0x1c0] sm:$0xff]
  %v140 = vld [vmem:[#allocation2 + $0x1c8] sm:$0xff]
  %v141 = vld [vmem:[#allocation2 + $0x1d0] sm:$0xff]
  %v142 = vld [vmem:[#allocation2 + $0x1d8] sm:$0xff]
  %v143 = vld [vmem:[#allocation2 + $0x1e0] sm:$0xff]
  %v144 = vld [vmem:[#allocation2 + $0x1e8] sm:$0xff]
  %v145 = vld [vmem:[#allocation2 + $0x1f0] sm:$0xff]
  %v146 = vld [vmem:[#allocation2 + $0x1f8] sm:$0xff]
  %v147 = vld [vmem:[%s0] sm:$0xff]
  %v148 = vld [vmem:[%s0 + $0x8] sm:$0xff]
  %v149 = vld [vmem:[%s0 + $0x10] sm:$0xff]
  %v150 = vld [vmem:[%s0 + $0x18] sm:$0xff]
  %v151 = vld [vmem:[%s0 + $0x20] sm:$0xff]
  %v152 = vld [vmem:[%s0 + $0x28] sm:$0xff]
  %v153 = vld [vmem:[%s0 + $0x30] sm:$0xff]
  %v154 = vld [vmem:[%s0 + $0x38] sm:$0xff]
  %v155 = vld [vmem:[%s0 + $0x40] sm:$0xff]
  %v156 = vld [vmem:[%s0 + $0x48] sm:$0xff]
  %v157 = vld [vmem:[%s0 + $0x50] sm:$0xff]
  %v158 = vld [vmem:[%s0 + $0x58] sm:$0xff]
  %v159 = vld [vmem:[%s0 + $0x60] sm:$0xff]
  %v160 = vld [vmem:[%s0 + $0x68] sm:$0xff]
  %v161 = vld [vmem:[%s0 + $0x70] sm:$0xff]
  %v162 = vld [vmem:[%s0 + $0x78] sm:$0xff]
  %v163 = vld [vmem:[%s0 + $0x80] sm:$0xff]
  %v164 = vld [vmem:[%s0 + $0x88] sm:$0xff]
  %v165 = vld [vmem:[%s0 + $0x90] sm:$0xff]
  %v166 = vld [vmem:[%s0 + $0x98] sm:$0xff]
  %v167 = vld [vmem:[%s0 + $0xa0] sm:$0xff]
  %v168 = vld [vmem:[%s0 + $0xa8] sm:$0xff]
  %v169 = vld [vmem:[%s0 + $0xb0] sm:$0xff]
  %v170 = vld [vmem:[%s0 + $0xb8] sm:$0xff]
  %v171 = vld [vmem:[%s0 + $0xc0] sm:$0xff]
  %v172 = vld [vmem:[%s0 + $0xc8] sm:$0xff]
  %v173 = vld [vmem:[%s0 + $0xd0] sm:$0xff]
  %v174 = vld [vmem:[%s0 + $0xd8] sm:$0xff]
  %v175 = vld [vmem:[%s0 + $0xe0] sm:$0xff]
  %v176 = vld [vmem:[%s0 + $0xe8] sm:$0xff]
  %v177 = vld [vmem:[%s0 + $0xf0] sm:$0xff]
  %v178 = vld [vmem:[%s0 + $0xf8] sm:$0xff]
  %v179 = vld [vmem:[%s0 + $0x100] sm:$0xff]
  %v180 = vld [vmem:[%s0 + $0x108] sm:$0xff]
  %v181 = vld [vmem:[%s0 + $0x110] sm:$0xff]
  %v182 = vld [vmem:[%s0 + $0x118] sm:$0xff]
  %v183 = vld [vmem:[%s0 + $0x120] sm:$0xff]
  %v184 = vld [vmem:[%s0 + $0x128] sm:$0xff]
  %v185 = vld [vmem:[%s0 + $0x130] sm:$0xff]
  %v186 = vld [vmem:[%s0 + $0x138] sm:$0xff]
  %v187 = vld [vmem:[%s0 + $0x140] sm:$0xff]
  %v188 = vld [vmem:[%s0 + $0x148] sm:$0xff]
  %v189 = vld [vmem:[%s0 + $0x150] sm:$0xff]
  %v190 = vld [vmem:[%s0 + $0x158] sm:$0xff]
  %v191 = vld [vmem:[%s0 + $0x160] sm:$0xff]
  %v192 = vld [vmem:[%s0 + $0x168] sm:$0xff]
  %v193 = vld [vmem:[%s0 + $0x170] sm:$0xff]
  %v194 = vld [vmem:[%s0 + $0x178] sm:$0xff]
  %v195 = vld [vmem:[%s0 + $0x180] sm:$0xff]
  %v196 = vld [vmem:[%s0 + $0x188] sm:$0xff]
  %v197 = vld [vmem:[%s0 + $0x190] sm:$0xff]
  %v198 = vld [vmem:[%s0 + $0x198] sm:$0xff]
  %v199 = vld [vmem:[%s0 + $0x1a0] sm:$0xff]
  %v200 = vld [vmem:[%s0 + $0x1a8] sm:$0xff]
  %v201 = vld [vmem:[%s0 + $0x1b0] sm:$0xff]
  %v202 = vld [vmem:[%s0 + $0x1b8] sm:$0xff]
  %v203 = vld [vmem:[%s0 + $0x1c0] sm:$0xff]
  %v204 = vld [vmem:[%s0 + $0x1c8] sm:$0xff]
  %v205 = vld [vmem:[%s0 + $0x1d0] sm:$0xff]
  %v206 = vld [vmem:[%s0 + $0x1d8] sm:$0xff]
  %v207 = vld [vmem:[%s0 + $0x1e0] sm:$0xff]
  %v208 = vld [vmem:[%s0 + $0x1e8] sm:$0xff]
  %v209 = vld [vmem:[%s0 + $0x1f0] sm:$0xff]
  %v210 = vld [vmem:[%s0 + $0x1f8] sm:$0xff]
  %v211 = vld [vmem:[%s1] sm:$0xff]
  %v212 = vld [vmem:[%s1 + $0x8] sm:$0xff]
  %v213 = vld [vmem:[%s1 + $0x10] sm:$0xff]
  %v214 = vld [vmem:[%s1 + $0x18] sm:$0xff]
  %vm215 = vcmask 261120
  %v217 = vsel %vm215, %v147, 0
  %v220 = vsel %vm215, %v148, 0
  %v223 = vsel %vm215, %v149, 0
  %v226 = vsel %vm215, %v150, 0
  %v229 = vsel %vm215, %v151, 0
  %v232 = vsel %vm215, %v152, 0
  %v235 = vsel %vm215, %v153, 0
  %v238 = vsel %vm215, %v154, 0
  %v241 = vsel %vm215, %v155, 0
  %v244 = vsel %vm215, %v156, 0
  %v247 = vsel %vm215, %v157, 0
  %v250 = vsel %vm215, %v158, 0
  %v253 = vsel %vm215, %v159, 0
  %v256 = vsel %vm215, %v160, 0
  %v259 = vsel %vm215, %v161, 0
  %v262 = vsel %vm215, %v162, 0
  %v265 = vsel %vm215, %v163, 0
  %v268 = vsel %vm215, %v164, 0
  %v271 = vsel %vm215, %v165, 0
  %v274 = vsel %vm215, %v166, 0
  %v277 = vsel %vm215, %v167, 0
  %v280 = vsel %vm215, %v168, 0
  %v283 = vsel %vm215, %v169, 0
  %v286 = vsel %vm215, %v170, 0
  %v289 = vsel %vm215, %v171, 0
  %v292 = vsel %vm215, %v172, 0
  %v295 = vsel %vm215, %v173, 0
  %v298 = vsel %vm215, %v174, 0
  %v301 = vsel %vm215, %v175, 0
  %v304 = vsel %vm215, %v176, 0
  %v307 = vsel %vm215, %v177, 0
  %v310 = vsel %vm215, %v178, 0
  %v313 = vsel %vm215, %v179, 0
  %v316 = vsel %vm215, %v180, 0
  %v319 = vsel %vm215, %v181, 0
  %v322 = vsel %vm215, %v182, 0
  %v325 = vsel %vm215, %v183, 0
  %v328 = vsel %vm215, %v184, 0
  %v331 = vsel %vm215, %v185, 0
  %v334 = vsel %vm215, %v186, 0
  %v337 = vsel %vm215, %v187, 0
  %v340 = vsel %vm215, %v188, 0
  %v343 = vsel %vm215, %v189, 0
  %v346 = vsel %vm215, %v190, 0
  %v349 = vsel %vm215, %v191, 0
  %v352 = vsel %vm215, %v192, 0
  %v355 = vsel %vm215, %v193, 0
  %v358 = vsel %vm215, %v194, 0
  %v361 = vsel %vm215, %v195, 0
  %v364 = vsel %vm215, %v196, 0
  %v367 = vsel %vm215, %v197, 0
  %v370 = vsel %vm215, %v198, 0
  %v373 = vsel %vm215, %v199, 0
  %v376 = vsel %vm215, %v200, 0
  %v379 = vsel %vm215, %v201, 0
  %v382 = vsel %vm215, %v202, 0
  %v385 = vsel %vm215, %v203, 0
  %v388 = vsel %vm215, %v204, 0
  %v391 = vsel %vm215, %v205, 0
  %v394 = vsel %vm215, %v206, 0
  %v397 = vsel %vm215, %v207, 0
  %v400 = vsel %vm215, %v208, 0
  %v403 = vsel %vm215, %v209, 0
  %v406 = vsel %vm215, %v210, 0
  %408 = vmatprep.subr.mxu0 0.0
  %409 = vmatpush1.msra.mxu0 %v211
  %410 = vmatprep.subr.mxu0 0.0
  %411 = vmatpush1.msra.mxu0 %v212
  %412 = vmatprep.subr.mxu0 0.0
  %413 = vmatpush1.msra.mxu0 %v213
  %414 = vmatprep.subr.mxu0 0.0
  %415 = vmatpush1.msra.mxu0 %v214
  %416 = vmatprep.subr.mxu0 0.0
  %417 = vmatpush1.msra.mxu0 0.0
  %418 = vmatprep.subr.mxu0 0.0
  %419 = vmatpush1.msra.mxu0 0.0
  %420 = vmatprep.subr.mxu0 0.0
  %421 = vmatpush1.msra.mxu0 0.0
  %422 = vmatprep.subr.mxu0 0.0
  %423 = vmatpush1.msra.mxu0 0.0
  %424 = vmatprep.subr.mxu0 0.0
  %425 = vmatpush1.msra.mxu0 0.0
  %426 = vmatprep.subr.mxu0 0.0
  %427 = vmatpush1.msra.mxu0 0.0
  %428 = vmatprep.subr.mxu0 0.0
  %429 = vmatpush1.msra.mxu0 0.0
  %430 = vmatprep.subr.mxu0 0.0
  %431 = vmatpush1.msra.mxu0 0.0
  %432 = vmatprep.subr.mxu0 0.0
  %433 = vmatpush1.msra.mxu0 0.0
  %434 = vmatprep.subr.mxu0 0.0
  %435 = vmatpush1.msra.mxu0 0.0
  %436 = vmatprep.subr.mxu0 0.0
  %437 = vmatpush1.msra.mxu0 0.0
  %438 = vmatprep.subr.mxu0 0.0
  %439 = vmatpush1.msra.mxu0 0.0
  %440 = vmatprep.subr.mxu0 0.0
  %441 = vmatpush1.msra.mxu0 0.0
  %442 = vmatprep.subr.mxu0 0.0
  %443 = vmatpush1.msra.mxu0 0.0
  %444 = vmatprep.subr.mxu0 0.0
  %445 = vmatpush1.msra.mxu0 0.0
  %446 = vmatprep.subr.mxu0 0.0
  %447 = vmatpush1.msra.mxu0 0.0
  %448 = vmatprep.subr.mxu0 0.0
  %449 = vmatpush1.msra.mxu0 0.0
  %450 = vmatprep.subr.mxu0 0.0
  %451 = vmatpush1.msra.mxu0 0.0
  %452 = vmatprep.subr.mxu0 0.0
  %453 = vmatpush1.msra.mxu0 0.0
  %454 = vmatprep.subr.mxu0 0.0
  %455 = vmatpush1.msra.mxu0 0.0
  %456 = vmatprep.subr.mxu0 0.0
  %457 = vmatpush1.msra.mxu0 0.0
  %458 = vmatprep.subr.mxu0 0.0
  %459 = vmatpush1.msra.mxu0 0.0
  %460 = vmatprep.subr.mxu0 0.0
  %461 = vmatpush1.msra.mxu0 0.0
  %462 = vmatprep.subr.mxu0 0.0
  %463 = vmatpush1.msra.mxu0 0.0
  %464 = vmatprep.subr.mxu0 0.0
  %465 = vmatpush1.msra.mxu0 0.0
  %466 = vmatprep.subr.mxu0 0.0
  %467 = vmatpush1.msra.mxu0 0.0
  %468 = vmatprep.subr.mxu0 0.0
  %469 = vmatpush1.msra.mxu0 0.0
  %470 = vmatprep.subr.mxu0 0.0
  %471 = vmatpush1.msra.mxu0 0.0
  %472 = vmatprep.mubr.f32.mxu0 0.0
  %473 = vmatmul.mubr.f32.gmra.mrb[0].mxu0 %v217
  %v474 = vpop.f32.mrb[0].mxu0
  %v475 = vadd.f32 0.0, %v474
  %v476 = vpop.f32.mrb[0].mxu0
  %477 = vmatprep.mubr.f32.mxu0 0.0
  %478 = vmatmul.mubr.f32.gmra.mrb[0].mxu0 %v220
  %v479 = vpop.f32.mrb[0].mxu0
  %v480 = vadd.f32 0.0, %v479
  %v481 = vpop.f32.mrb[0].mxu0
  %482 = vmatprep.mubr.f32.mxu0 0.0
  %483 = vmatmul.mubr.f32.gmra.mrb[0].mxu0 %v223
  %v484 = vpop.f32.mrb[0].mxu0
  %v485 = vadd.f32 0.0, %v484
  %v486 = vpop.f32.mrb[0].mxu0
  %487 = vmatprep.mubr.f32.mxu0 0.0
  %488 = vmatmul.mubr.f32.gmra.mrb[0].mxu0 %v226
  %v489 = vpop.f32.mrb[0].mxu0
  %v490 = vadd.f32 0.0, %v489
  %v491 = vpop.f32.mrb[0].mxu0
  %492 = vmatprep.mubr.f32.mxu0 0.0
  %493 = vmatmul.mubr.f32.gmra.mrb[0].mxu0 %v229
  %v494 = vpop.f32.mrb[0].mxu0
  %v495 = vadd.f32 0.0, %v494
  %v496 = vpop.f32.mrb[0].mxu0
  %497 = vmatprep.mubr.f32.mxu0 0.0
  %498 = vmatmul.mubr.f32.gmra.mrb[0].mxu0 %v232
  %v499 = vpop.f32.mrb[0].mxu0
  %v500 = vadd.f32 0.0, %v499
  %v501 = vpop.f32.mrb[0].mxu0
  %502 = vmatprep.mubr.f32.mxu0 0.0
  %503 = vmatmul.mubr.f32.gmra.mrb[0].mxu0 %v235
  %v504 = vpop.f32.mrb[0].mxu0
  %v505 = vadd.f32 0.0, %v504
  %v506 = vpop.f32.mrb[0].mxu0
  %507 = vmatprep.mubr.f32.mxu0 0.0
  %508 = vmatmul.mubr.f32.gmra.mrb[0].mxu0 %v238
  %v509 = vpop.f32.mrb[0].mxu0
  %v510 = vadd.f32 0.0, %v509
  %v511 = vpop.f32.mrb[0].mxu0
  %512 = vmatprep.mubr.f32.mxu0 0.0
  %513 = vmatmul.mubr.f32.gmra.mrb[0].mxu0 %v241
  %v514 = vpop.f32.mrb[0].mxu0
  %v515 = vadd.f32 0.0, %v514
  %v516 = vpop.f32.mrb[0].mxu0
  %517 = vmatprep.mubr.f32.mxu0 0.0
  %518 = vmatmul.mubr.f32.gmra.mrb[0].mxu0 %v244
  %v519 = vpop.f32.mrb[0].mxu0
  %v520 = vadd.f32 0.0, %v519
  %v521 = vpop.f32.mrb[0].mxu0
  %522 = vmatprep.mubr.f32.mxu0 0.0
  %523 = vmatmul.mubr.f32.gmra.mrb[0].mxu0 %v247
  %v524 = vpop.f32.mrb[0].mxu0
  %v525 = vadd.f32 0.0, %v524
  %v526 = vpop.f32.mrb[0].mxu0
  %527 = vmatprep.mubr.f32.mxu0 0.0
  %528 = vmatmul.mubr.f32.gmra.mrb[0].mxu0 %v250
  %v529 = vpop.f32.mrb[0].mxu0
  %v530 = vadd.f32 0.0, %v529
  %v531 = vpop.f32.mrb[0].mxu0
  %532 = vmatprep.mubr.f32.mxu0 0.0
  %533 = vmatmul.mubr.f32.gmra.mrb[0].mxu0 %v253
  %v534 = vpop.f32.mrb[0].mxu0
  %v535 = vadd.f32 0.0, %v534
  %v536 = vpop.f32.mrb[0].mxu0
  %537 = vmatprep.mubr.f32.mxu0 0.0
  %538 = vmatmul.mubr.f32.gmra.mrb[0].mxu0 %v256
  %v539 = vpop.f32.mrb[0].mxu0
  %v540 = vadd.f32 0.0, %v539
  %v541 = vpop.f32.mrb[0].mxu0
  %542 = vmatprep.mubr.f32.mxu0 0.0
  %543 = vmatmul.mubr.f32.gmra.mrb[0].mxu0 %v259
  %v544 = vpop.f32.mrb[0].mxu0
  %v545 = vadd.f32 0.0, %v544
  %v546 = vpop.f32.mrb[0].mxu0
  %547 = vmatprep.mubr.f32.mxu0 0.0
  %548 = vmatmul.mubr.f32.gmra.mrb[0].mxu0 %v262
  %v549 = vpop.f32.mrb[0].mxu0
  %v550 = vadd.f32 0.0, %v549
  %v551 = vpop.f32.mrb[0].mxu0
  %552 = vmatprep.mubr.f32.mxu0 0.0
  %553 = vmatmul.mubr.f32.gmra.mrb[0].mxu0 %v265
  %v554 = vpop.f32.mrb[0].mxu0
  %v555 = vadd.f32 0.0, %v554
  %v556 = vpop.f32.mrb[0].mxu0
  %557 = vmatprep.mubr.f32.mxu0 0.0
  %558 = vmatmul.mubr.f32.gmra.mrb[0].mxu0 %v268
  %v559 = vpop.f32.mrb[0].mxu0
  %v560 = vadd.f32 0.0, %v559
  %v561 = vpop.f32.mrb[0].mxu0
  %562 = vmatprep.mubr.f32.mxu0 0.0
  %563 = vmatmul.mubr.f32.gmra.mrb[0].mxu0 %v271
  %v564 = vpop.f32.mrb[0].mxu0
  %v565 = vadd.f32 0.0, %v564
  %v566 = vpop.f32.mrb[0].mxu0
  %567 = vmatprep.mubr.f32.mxu0 0.0
  %568 = vmatmul.mubr.f32.gmra.mrb[0].mxu0 %v274
  %v569 = vpop.f32.mrb[0].mxu0
  %v570 = vadd.f32 0.0, %v569
  %v571 = vpop.f32.mrb[0].mxu0
  %572 = vmatprep.mubr.f32.mxu0 0.0
  %573 = vmatmul.mubr.f32.gmra.mrb[0].mxu0 %v277
  %v574 = vpop.f32.mrb[0].mxu0
  %v575 = vadd.f32 0.0, %v574
  %v576 = vpop.f32.mrb[0].mxu0
  %577 = vmatprep.mubr.f32.mxu0 0.0
  %578 = vmatmul.mubr.f32.gmra.mrb[0].mxu0 %v280
  %v579 = vpop.f32.mrb[0].mxu0
  %v580 = vadd.f32 0.0, %v579
  %v581 = vpop.f32.mrb[0].mxu0
  %582 = vmatprep.mubr.f32.mxu0 0.0
  %583 = vmatmul.mubr.f32.gmra.mrb[0].mxu0 %v283
  %v584 = vpop.f32.mrb[0].mxu0
  %v585 = vadd.f32 0.0, %v584
  %v586 = vpop.f32.mrb[0].mxu0
  %587 = vmatprep.mubr.f32.mxu0 0.0
  %588 = vmatmul.mubr.f32.gmra.mrb[0].mxu0 %v286
  %v589 = vpop.f32.mrb[0].mxu0
  %v590 = vadd.f32 0.0, %v589
  %v591 = vpop.f32.mrb[0].mxu0
  %592 = vmatprep.mubr.f32.mxu0 0.0
  %593 = vmatmul.mubr.f32.gmra.mrb[0].mxu0 %v289
  %v594 = vpop.f32.mrb[0].mxu0
  %v595 = vadd.f32 0.0, %v594
  %v596 = vpop.f32.mrb[0].mxu0
  %597 = vmatprep.mubr.f32.mxu0 0.0
  %598 = vmatmul.mubr.f32.gmra.mrb[0].mxu0 %v292
  %v599 = vpop.f32.mrb[0].mxu0
  %v600 = vadd.f32 0.0, %v599
  %v601 = vpop.f32.mrb[0].mxu0
  %602 = vmatprep.mubr.f32.mxu0 0.0
  %603 = vmatmul.mubr.f32.gmra.mrb[0].mxu0 %v295
  %v604 = vpop.f32.mrb[0].mxu0
  %v605 = vadd.f32 0.0, %v604
  %v606 = vpop.f32.mrb[0].mxu0
  %607 = vmatprep.mubr.f32.mxu0 0.0
  %608 = vmatmul.mubr.f32.gmra.mrb[0].mxu0 %v298
  %v609 = vpop.f32.mrb[0].mxu0
  %v610 = vadd.f32 0.0, %v609
  %v611 = vpop.f32.mrb[0].mxu0
  %612 = vmatprep.mubr.f32.mxu0 0.0
  %613 = vmatmul.mubr.f32.gmra.mrb[0].mxu0 %v301
  %v614 = vpop.f32.mrb[0].mxu0
  %v615 = vadd.f32 0.0, %v614
  %v616 = vpop.f32.mrb[0].mxu0
  %617 = vmatprep.mubr.f32.mxu0 0.0
  %618 = vmatmul.mubr.f32.gmra.mrb[0].mxu0 %v304
  %v619 = vpop.f32.mrb[0].mxu0
  %v620 = vadd.f32 0.0, %v619
  %v621 = vpop.f32.mrb[0].mxu0
  %622 = vmatprep.mubr.f32.mxu0 0.0
  %623 = vmatmul.mubr.f32.gmra.mrb[0].mxu0 %v307
  %v624 = vpop.f32.mrb[0].mxu0
  %v625 = vadd.f32 0.0, %v624
  %v626 = vpop.f32.mrb[0].mxu0
  %627 = vmatprep.mubr.f32.mxu0 0.0
  %628 = vmatmul.mubr.f32.gmra.mrb[0].mxu0 %v310
  %v629 = vpop.f32.mrb[0].mxu0
  %v630 = vadd.f32 0.0, %v629
  %v631 = vpop.f32.mrb[0].mxu0
  %632 = vmatprep.mubr.f32.mxu0 0.0
  %633 = vmatmul.mubr.f32.gmra.mrb[0].mxu0 %v313
  %v634 = vpop.f32.mrb[0].mxu0
  %v635 = vadd.f32 0.0, %v634
  %v636 = vpop.f32.mrb[0].mxu0
  %637 = vmatprep.mubr.f32.mxu0 0.0
  %638 = vmatmul.mubr.f32.gmra.mrb[0].mxu0 %v316
  %v639 = vpop.f32.mrb[0].mxu0
  %v640 = vadd.f32 0.0, %v639
  %v641 = vpop.f32.mrb[0].mxu0
  %642 = vmatprep.mubr.f32.mxu0 0.0
  %643 = vmatmul.mubr.f32.gmra.mrb[0].mxu0 %v319
  %v644 = vpop.f32.mrb[0].mxu0
  %v645 = vadd.f32 0.0, %v644
  %v646 = vpop.f32.mrb[0].mxu0
  %647 = vmatprep.mubr.f32.mxu0 0.0
  %648 = vmatmul.mubr.f32.gmra.mrb[0].mxu0 %v322
  %v649 = vpop.f32.mrb[0].mxu0
  %v650 = vadd.f32 0.0, %v649
  %v651 = vpop.f32.mrb[0].mxu0
  %652 = vmatprep.mubr.f32.mxu0 0.0
  %653 = vmatmul.mubr.f32.gmra.mrb[0].mxu0 %v325
  %v654 = vpop.f32.mrb[0].mxu0
  %v655 = vadd.f32 0.0, %v654
  %v656 = vpop.f32.mrb[0].mxu0
  %657 = vmatprep.mubr.f32.mxu0 0.0
  %658 = vmatmul.mubr.f32.gmra.mrb[0].mxu0 %v328
  %v659 = vpop.f32.mrb[0].mxu0
  %v660 = vadd.f32 0.0, %v659
  %v661 = vpop.f32.mrb[0].mxu0
  %662 = vmatprep.mubr.f32.mxu0 0.0
  %663 = vmatmul.mubr.f32.gmra.mrb[0].mxu0 %v331
  %v664 = vpop.f32.mrb[0].mxu0
  %v665 = vadd.f32 0.0, %v664
  %v666 = vpop.f32.mrb[0].mxu0
  %667 = vmatprep.mubr.f32.mxu0 0.0
  %668 = vmatmul.mubr.f32.gmra.mrb[0].mxu0 %v334
  %v669 = vpop.f32.mrb[0].mxu0
  %v670 = vadd.f32 0.0, %v669
  %v671 = vpop.f32.mrb[0].mxu0
  %672 = vmatprep.mubr.f32.mxu0 0.0
  %673 = vmatmul.mubr.f32.gmra.mrb[0].mxu0 %v337
  %v674 = vpop.f32.mrb[0].mxu0
  %v675 = vadd.f32 0.0, %v674
  %v676 = vpop.f32.mrb[0].mxu0
  %677 = vmatprep.mubr.f32.mxu0 0.0
  %678 = vmatmul.mubr.f32.gmra.mrb[0].mxu0 %v340
  %v679 = vpop.f32.mrb[0].mxu0
  %v680 = vadd.f32 0.0, %v679
  %v681 = vpop.f32.mrb[0].mxu0
  %682 = vmatprep.mubr.f32.mxu0 0.0
  %683 = vmatmul.mubr.f32.gmra.mrb[0].mxu0 %v343
  %v684 = vpop.f32.mrb[0].mxu0
  %v685 = vadd.f32 0.0, %v684
  %v686 = vpop.f32.mrb[0].mxu0
  %687 = vmatprep.mubr.f32.mxu0 0.0
  %688 = vmatmul.mubr.f32.gmra.mrb[0].mxu0 %v346
  %v689 = vpop.f32.mrb[0].mxu0
  %v690 = vadd.f32 0.0, %v689
  %v691 = vpop.f32.mrb[0].mxu0
  %692 = vmatprep.mubr.f32.mxu0 0.0
  %693 = vmatmul.mubr.f32.gmra.mrb[0].mxu0 %v349
  %v694 = vpop.f32.mrb[0].mxu0
  %v695 = vadd.f32 0.0, %v694
  %v696 = vpop.f32.mrb[0].mxu0
  %697 = vmatprep.mubr.f32.mxu0 0.0
  %698 = vmatmul.mubr.f32.gmra.mrb[0].mxu0 %v352
  %v699 = vpop.f32.mrb[0].mxu0
  %v700 = vadd.f32 0.0, %v699
  %v701 = vpop.f32.mrb[0].mxu0
  %702 = vmatprep.mubr.f32.mxu0 0.0
  %703 = vmatmul.mubr.f32.gmra.mrb[0].mxu0 %v355
  %v704 = vpop.f32.mrb[0].mxu0
  %v705 = vadd.f32 0.0, %v704
  %v706 = vpop.f32.mrb[0].mxu0
  %707 = vmatprep.mubr.f32.mxu0 0.0
  %708 = vmatmul.mubr.f32.gmra.mrb[0].mxu0 %v358
  %v709 = vpop.f32.mrb[0].mxu0
  %v710 = vadd.f32 0.0, %v709
  %v711 = vpop.f32.mrb[0].mxu0
  %712 = vmatprep.mubr.f32.mxu0 0.0
  %713 = vmatmul.mubr.f32.gmra.mrb[0].mxu0 %v361
  %v714 = vpop.f32.mrb[0].mxu0
  %v715 = vadd.f32 0.0, %v714
  %v716 = vpop.f32.mrb[0].mxu0
  %717 = vmatprep.mubr.f32.mxu0 0.0
  %718 = vmatmul.mubr.f32.gmra.mrb[0].mxu0 %v364
  %v719 = vpop.f32.mrb[0].mxu0
  %v720 = vadd.f32 0.0, %v719
  %v721 = vpop.f32.mrb[0].mxu0
  %722 = vmatprep.mubr.f32.mxu0 0.0
  %723 = vmatmul.mubr.f32.gmra.mrb[0].mxu0 %v367
  %v724 = vpop.f32.mrb[0].mxu0
  %v725 = vadd.f32 0.0, %v724
  %v726 = vpop.f32.mrb[0].mxu0
  %727 = vmatprep.mubr.f32.mxu0 0.0
  %728 = vmatmul.mubr.f32.gmra.mrb[0].mxu0 %v370
  %v729 = vpop.f32.mrb[0].mxu0
  %v730 = vadd.f32 0.0, %v729
  %v731 = vpop.f32.mrb[0].mxu0
  %732 = vmatprep.mubr.f32.mxu0 0.0
  %733 = vmatmul.mubr.f32.gmra.mrb[0].mxu0 %v373
  %v734 = vpop.f32.mrb[0].mxu0
  %v735 = vadd.f32 0.0, %v734
  %v736 = vpop.f32.mrb[0].mxu0
  %737 = vmatprep.mubr.f32.mxu0 0.0
  %738 = vmatmul.mubr.f32.gmra.mrb[0].mxu0 %v376
  %v739 = vpop.f32.mrb[0].mxu0
  %v740 = vadd.f32 0.0, %v739
  %v741 = vpop.f32.mrb[0].mxu0
  %742 = vmatprep.mubr.f32.mxu0 0.0
  %743 = vmatmul.mubr.f32.gmra.mrb[0].mxu0 %v379
  %v744 = vpop.f32.mrb[0].mxu0
  %v745 = vadd.f32 0.0, %v744
  %v746 = vpop.f32.mrb[0].mxu0
  %747 = vmatprep.mubr.f32.mxu0 0.0
  %748 = vmatmul.mubr.f32.gmra.mrb[0].mxu0 %v382
  %v749 = vpop.f32.mrb[0].mxu0
  %v750 = vadd.f32 0.0, %v749
  %v751 = vpop.f32.mrb[0].mxu0
  %752 = vmatprep.mubr.f32.mxu0 0.0
  %753 = vmatmul.mubr.f32.gmra.mrb[0].mxu0 %v385
  %v754 = vpop.f32.mrb[0].mxu0
  %v755 = vadd.f32 0.0, %v754
  %v756 = vpop.f32.mrb[0].mxu0
  %757 = vmatprep.mubr.f32.mxu0 0.0
  %758 = vmatmul.mubr.f32.gmra.mrb[0].mxu0 %v388
  %v759 = vpop.f32.mrb[0].mxu0
  %v760 = vadd.f32 0.0, %v759
  %v761 = vpop.f32.mrb[0].mxu0
  %762 = vmatprep.mubr.f32.mxu0 0.0
  %763 = vmatmul.mubr.f32.gmra.mrb[0].mxu0 %v391
  %v764 = vpop.f32.mrb[0].mxu0
  %v765 = vadd.f32 0.0, %v764
  %v766 = vpop.f32.mrb[0].mxu0
  %767 = vmatprep.mubr.f32.mxu0 0.0
  %768 = vmatmul.mubr.f32.gmra.mrb[0].mxu0 %v394
  %v769 = vpop.f32.mrb[0].mxu0
  %v770 = vadd.f32 0.0, %v769
  %v771 = vpop.f32.mrb[0].mxu0
  %772 = vmatprep.mubr.f32.mxu0 0.0
  %773 = vmatmul.mubr.f32.gmra.mrb[0].mxu0 %v397
  %v774 = vpop.f32.mrb[0].mxu0
  %v775 = vadd.f32 0.0, %v774
  %v776 = vpop.f32.mrb[0].mxu0
  %777 = vmatprep.mubr.f32.mxu0 0.0
  %778 = vmatmul.mubr.f32.gmra.mrb[0].mxu0 %v400
  %v779 = vpop.f32.mrb[0].mxu0
  %v780 = vadd.f32 0.0, %v779
  %v781 = vpop.f32.mrb[0].mxu0
  %782 = vmatprep.mubr.f32.mxu0 0.0
  %783 = vmatmul.mubr.f32.gmra.mrb[0].mxu0 %v403
  %v784 = vpop.f32.mrb[0].mxu0
  %v785 = vadd.f32 0.0, %v784
  %v786 = vpop.f32.mrb[0].mxu0
  %787 = vmatprep.mubr.f32.mxu0 0.0
  %788 = vmatmul.mubr.f32.gmra.mrb[0].mxu0 %v406
  %v789 = vpop.f32.mrb[0].mxu0
  %v790 = vadd.f32 0.0, %v789
  %v791 = vpop.f32.mrb[0].mxu0
  %792 = vdwg.mxu0
  %v793 = vadd.f32 %v83, %v475
  %v794 = vadd.f32 %v84, %v480
  %v795 = vadd.f32 %v85, %v485
  %v796 = vadd.f32 %v86, %v490
  %v797 = vadd.f32 %v87, %v495
  %v798 = vadd.f32 %v88, %v500
  %v799 = vadd.f32 %v89, %v505
  %v800 = vadd.f32 %v90, %v510
  %v801 = vadd.f32 %v91, %v515
  %v802 = vadd.f32 %v92, %v520
  %v803 = vadd.f32 %v93, %v525
  %v804 = vadd.f32 %v94, %v530
  %v805 = vadd.f32 %v95, %v535
  %v806 = vadd.f32 %v96, %v540
  %v807 = vadd.f32 %v97, %v545
  %v808 = vadd.f32 %v98, %v550
  %v809 = vadd.f32 %v99, %v555
  %v810 = vadd.f32 %v100, %v560
  %v811 = vadd.f32 %v101, %v565
  %v812 = vadd.f32 %v102, %v570
  %v813 = vadd.f32 %v103, %v575
  %v814 = vadd.f32 %v104, %v580
  %v815 = vadd.f32 %v105, %v585
  %v816 = vadd.f32 %v106, %v590
  %v817 = vadd.f32 %v107, %v595
  %v818 = vadd.f32 %v108, %v600
  %v819 = vadd.f32 %v109, %v605
  %v820 = vadd.f32 %v110, %v610
  %v821 = vadd.f32 %v111, %v615
  %v822 = vadd.f32 %v112, %v620
  %v823 = vadd.f32 %v113, %v625
  %v824 = vadd.f32 %v114, %v630
  %v825 = vadd.f32 %v115, %v635
  %v826 = vadd.f32 %v116, %v640
  %v827 = vadd.f32 %v117, %v645
  %v828 = vadd.f32 %v118, %v650
  %v829 = vadd.f32 %v119, %v655
  %v830 = vadd.f32 %v120, %v660
  %v831 = vadd.f32 %v121, %v665
  %v832 = vadd.f32 %v122, %v670
  %v833 = vadd.f32 %v123, %v675
  %v834 = vadd.f32 %v124, %v680
  %v835 = vadd.f32 %v125, %v685
  %v836 = vadd.f32 %v126, %v690
  %v837 = vadd.f32 %v127, %v695
  %v838 = vadd.f32 %v128, %v700
  %v839 = vadd.f32 %v129, %v705
  %v840 = vadd.f32 %v130, %v710
  %v841 = vadd.f32 %v131, %v715
  %v842 = vadd.f32 %v132, %v720
  %v843 = vadd.f32 %v133, %v725
  %v844 = vadd.f32 %v134, %v730
  %v845 = vadd.f32 %v135, %v735
  %v846 = vadd.f32 %v136, %v740
  %v847 = vadd.f32 %v137, %v745
  %v848 = vadd.f32 %v138, %v750
  %v849 = vadd.f32 %v139, %v755
  %v850 = vadd.f32 %v140, %v760
  %v851 = vadd.f32 %v141, %v765
  %v852 = vadd.f32 %v142, %v770
  %v853 = vadd.f32 %v143, %v775
  %v854 = vadd.f32 %v144, %v780
  %v855 = vadd.f32 %v145, %v785
  %v856 = vadd.f32 %v146, %v790
  %vm857 = vcmask 523264
  %858 = vst.msk [vmem:[#allocation2] sm:$0xff] %vm857, %v793
  %859 = vst.msk [vmem:[#allocation2 + $0x8] sm:$0xff] %vm857, %v794
  %860 = vst.msk [vmem:[#allocation2 + $0x10] sm:$0xff] %vm857, %v795
  %861 = vst.msk [vmem:[#allocation2 + $0x18] sm:$0xff] %vm857, %v796
  %862 = vst.msk [vmem:[#allocation2 + $0x20] sm:$0xff] %vm857, %v797
  %863 = vst.msk [vmem:[#allocation2 + $0x28] sm:$0xff] %vm857, %v798
  %864 = vst.msk [vmem:[#allocation2 + $0x30] sm:$0xff] %vm857, %v799
  %865 = vst.msk [vmem:[#allocation2 + $0x38] sm:$0xff] %vm857, %v800
  %866 = vst.msk [vmem:[#allocation2 + $0x40] sm:$0xff] %vm857, %v801
  %867 = vst.msk [vmem:[#allocation2 + $0x48] sm:$0xff] %vm857, %v802
  %868 = vst.msk [vmem:[#allocation2 + $0x50] sm:$0xff] %vm857, %v803
  %869 = vst.msk [vmem:[#allocation2 + $0x58] sm:$0xff] %vm857, %v804
  %870 = vst.msk [vmem:[#allocation2 + $0x60] sm:$0xff] %vm857, %v805
  %871 = vst.msk [vmem:[#allocation2 + $0x68] sm:$0xff] %vm857, %v806
  %872 = vst.msk [vmem:[#allocation2 + $0x70] sm:$0xff] %vm857, %v807
  %873 = vst.msk [vmem:[#allocation2 + $0x78] sm:$0xff] %vm857, %v808
  %874 = vst.msk [vmem:[#allocation2 + $0x80] sm:$0xff] %vm857, %v809
  %875 = vst.msk [vmem:[#allocation2 + $0x88] sm:$0xff] %vm857, %v810
  %876 = vst.msk [vmem:[#allocation2 + $0x90] sm:$0xff] %vm857, %v811
  %877 = vst.msk [vmem:[#allocation2 + $0x98] sm:$0xff] %vm857, %v812
  %878 = vst.msk [vmem:[#allocation2 + $0xa0] sm:$0xff] %vm857, %v813
  %879 = vst.msk [vmem:[#allocation2 + $0xa8] sm:$0xff] %vm857, %v814
  %880 = vst.msk [vmem:[#allocation2 + $0xb0] sm:$0xff] %vm857, %v815
  %881 = vst.msk [vmem:[#allocation2 + $0xb8] sm:$0xff] %vm857, %v816
  %882 = vst.msk [vmem:[#allocation2 + $0xc0] sm:$0xff] %vm857, %v817
  %883 = vst.msk [vmem:[#allocation2 + $0xc8] sm:$0xff] %vm857, %v818
  %884 = vst.msk [vmem:[#allocation2 + $0xd0] sm:$0xff] %vm857, %v819
  %885 = vst.msk [vmem:[#allocation2 + $0xd8] sm:$0xff] %vm857, %v820
  %886 = vst.msk [vmem:[#allocation2 + $0xe0] sm:$0xff] %vm857, %v821
  %887 = vst.msk [vmem:[#allocation2 + $0xe8] sm:$0xff] %vm857, %v822
  %888 = vst.msk [vmem:[#allocation2 + $0xf0] sm:$0xff] %vm857, %v823
  %889 = vst.msk [vmem:[#allocation2 + $0xf8] sm:$0xff] %vm857, %v824
  %890 = vst.msk [vmem:[#allocation2 + $0x100] sm:$0xff] %vm857, %v825
  %891 = vst.msk [vmem:[#allocation2 + $0x108] sm:$0xff] %vm857, %v826
  %892 = vst.msk [vmem:[#allocation2 + $0x110] sm:$0xff] %vm857, %v827
  %893 = vst.msk [vmem:[#allocation2 + $0x118] sm:$0xff] %vm857, %v828
  %894 = vst.msk [vmem:[#allocation2 + $0x120] sm:$0xff] %vm857, %v829
  %895 = vst.msk [vmem:[#allocation2 + $0x128] sm:$0xff] %vm857, %v830
  %896 = vst.msk [vmem:[#allocation2 + $0x130] sm:$0xff] %vm857, %v831
  %897 = vst.msk [vmem:[#allocation2 + $0x138] sm:$0xff] %vm857, %v832
  %898 = vst.msk [vmem:[#allocation2 + $0x140] sm:$0xff] %vm857, %v833
  %899 = vst.msk [vmem:[#allocation2 + $0x148] sm:$0xff] %vm857, %v834
  %900 = vst.msk [vmem:[#allocation2 + $0x150] sm:$0xff] %vm857, %v835
  %901 = vst.msk [vmem:[#allocation2 + $0x158] sm:$0xff] %vm857, %v836
  %902 = vst.msk [vmem:[#allocation2 + $0x160] sm:$0xff] %vm857, %v837
  %903 = vst.msk [vmem:[#allocation2 + $0x168] sm:$0xff] %vm857, %v838
  %904 = vst.msk [vmem:[#allocation2 + $0x170] sm:$0xff] %vm857, %v839
  %905 = vst.msk [vmem:[#allocation2 + $0x178] sm:$0xff] %vm857, %v840
  %906 = vst.msk [vmem:[#allocation2 + $0x180] sm:$0xff] %vm857, %v841
  %907 = vst.msk [vmem:[#allocation2 + $0x188] sm:$0xff] %vm857, %v842
  %908 = vst.msk [vmem:[#allocation2 + $0x190] sm:$0xff] %vm857, %v843
  %909 = vst.msk [vmem:[#allocation2 + $0x198] sm:$0xff] %vm857, %v844
  %910 = vst.msk [vmem:[#allocation2 + $0x1a0] sm:$0xff] %vm857, %v845
  %911 = vst.msk [vmem:[#allocation2 + $0x1a8] sm:$0xff] %vm857, %v846
  %912 = vst.msk [vmem:[#allocation2 + $0x1b0] sm:$0xff] %vm857, %v847
  %913 = vst.msk [vmem:[#allocation2 + $0x1b8] sm:$0xff] %vm857, %v848
  %914 = vst.msk [vmem:[#allocation2 + $0x1c0] sm:$0xff] %vm857, %v849
  %915 = vst.msk [vmem:[#allocation2 + $0x1c8] sm:$0xff] %vm857, %v850
  %916 = vst.msk [vmem:[#allocation2 + $0x1d0] sm:$0xff] %vm857, %v851
  %917 = vst.msk [vmem:[#allocation2 + $0x1d8] sm:$0xff] %vm857, %v852
  %918 = vst.msk [vmem:[#allocation2 + $0x1e0] sm:$0xff] %vm857, %v853
  %919 = vst.msk [vmem:[#allocation2 + $0x1e8] sm:$0xff] %vm857, %v854
  %920 = vst.msk [vmem:[#allocation2 + $0x1f0] sm:$0xff] %vm857, %v855
  %921 = vst.msk [vmem:[#allocation2 + $0x1f8] sm:$0xff] %vm857, %v856
  // Predicated region
  $region18: #{tpu_custom_call.1} parent=0 // pred_check
    %p922 = pneg %p14
  $region19: #{tpu_custom_call.1} parent=0 // pred_check_branch
    %924 = sbr.rel (%p922) target = $region21
  $region20: #{tpu_custom_call.1} parent=0 // pred_region
    %v925 = vld [vmem:[#allocation2] sm:$0xff]
    %v926 = vld [vmem:[#allocation2 + $0x8] sm:$0xff]
    %v927 = vld [vmem:[#allocation2 + $0x10] sm:$0xff]
    %v928 = vld [vmem:[#allocation2 + $0x18] sm:$0xff]
    %v929 = vld [vmem:[#allocation2 + $0x20] sm:$0xff]
    %v930 = vld [vmem:[#allocation2 + $0x28] sm:$0xff]
    %v931 = vld [vmem:[#allocation2 + $0x30] sm:$0xff]
    %v932 = vld [vmem:[#allocation2 + $0x38] sm:$0xff]
    %v933 = vld [vmem:[#allocation2 + $0x40] sm:$0xff]
    %v934 = vld [vmem:[#allocation2 + $0x48] sm:$0xff]
    %v935 = vld [vmem:[#allocation2 + $0x50] sm:$0xff]
    %v936 = vld [vmem:[#allocation2 + $0x58] sm:$0xff]
    %v937 = vld [vmem:[#allocation2 + $0x60] sm:$0xff]
    %v938 = vld [vmem:[#allocation2 + $0x68] sm:$0xff]
    %v939 = vld [vmem:[#allocation2 + $0x70] sm:$0xff]
    %v940 = vld [vmem:[#allocation2 + $0x78] sm:$0xff]
    %v941 = vld [vmem:[#allocation2 + $0x80] sm:$0xff]
    %v942 = vld [vmem:[#allocation2 + $0x88] sm:$0xff]
    %v943 = vld [vmem:[#allocation2 + $0x90] sm:$0xff]
    %v944 = vld [vmem:[#allocation2 + $0x98] sm:$0xff]
    %v945 = vld [vmem:[#allocation2 + $0xa0] sm:$0xff]
    %v946 = vld [vmem:[#allocation2 + $0xa8] sm:$0xff]
    %v947 = vld [vmem:[#allocation2 + $0xb0] sm:$0xff]
    %v948 = vld [vmem:[#allocation2 + $0xb8] sm:$0xff]
    %v949 = vld [vmem:[#allocation2 + $0xc0] sm:$0xff]
    %v950 = vld [vmem:[#allocation2 + $0xc8] sm:$0xff]
    %v951 = vld [vmem:[#allocation2 + $0xd0] sm:$0xff]
    %v952 = vld [vmem:[#allocation2 + $0xd8] sm:$0xff]
    %v953 = vld [vmem:[#allocation2 + $0xe0] sm:$0xff]
    %v954 = vld [vmem:[#allocation2 + $0xe8] sm:$0xff]
    %v955 = vld [vmem:[#allocation2 + $0xf0] sm:$0xff]
    %v956 = vld [vmem:[#allocation2 + $0xf8] sm:$0xff]
    %v957 = vld [vmem:[#allocation2 + $0x100] sm:$0xff]
    %v958 = vld [vmem:[#allocation2 + $0x108] sm:$0xff]
    %v959 = vld [vmem:[#allocation2 + $0x110] sm:$0xff]
    %v960 = vld [vmem:[#allocation2 + $0x118] sm:$0xff]
    %v961 = vld [vmem:[#allocation2 + $0x120] sm:$0xff]
    %v962 = vld [vmem:[#allocation2 + $0x128] sm:$0xff]
    %v963 = vld [vmem:[#allocation2 + $0x130] sm:$0xff]
    %v964 = vld [vmem:[#allocation2 + $0x138] sm:$0xff]
    %v965 = vld [vmem:[#allocation2 + $0x140] sm:$0xff]
    %v966 = vld [vmem:[#allocation2 + $0x148] sm:$0xff]
    %v967 = vld [vmem:[#allocation2 + $0x150] sm:$0xff]
    %v968 = vld [vmem:[#allocation2 + $0x158] sm:$0xff]
    %v969 = vld [vmem:[#allocation2 + $0x160] sm:$0xff]
    %v970 = vld [vmem:[#allocation2 + $0x168] sm:$0xff]
    %v971 = vld [vmem:[#allocation2 + $0x170] sm:$0xff]
    %v972 = vld [vmem:[#allocation2 + $0x178] sm:$0xff]
    %v973 = vld [vmem:[#allocation2 + $0x180] sm:$0xff]
    %v974 = vld [vmem:[#allocation2 + $0x188] sm:$0xff]
    %v975 = vld [vmem:[#allocation2 + $0x190] sm:$0xff]
    %v976 = vld [vmem:[#allocation2 + $0x198] sm:$0xff]
    %v977 = vld [vmem:[#allocation2 + $0x1a0] sm:$0xff]
    %v978 = vld [vmem:[#allocation2 + $0x1a8] sm:$0xff]
    %v979 = vld [vmem:[#allocation2 + $0x1b0] sm:$0xff]
    %v980 = vld [vmem:[#allocation2 + $0x1b8] sm:$0xff]
    %v981 = vld [vmem:[#allocation2 + $0x1c0] sm:$0xff]
    %v982 = vld [vmem:[#allocation2 + $0x1c8] sm:$0xff]
    %v983 = vld [vmem:[#allocation2 + $0x1d0] sm:$0xff]
    %v984 = vld [vmem:[#allocation2 + $0x1d8] sm:$0xff]
    %v985 = vld [vmem:[#allocation2 + $0x1e0] sm:$0xff]
    %v986 = vld [vmem:[#allocation2 + $0x1e8] sm:$0xff]
    %v987 = vld [vmem:[#allocation2 + $0x1f0] sm:$0xff]
    %v988 = vld [vmem:[#allocation2 + $0x1f8] sm:$0xff]
    %v989 = vld [vmem:[%s2] sm:$0x1]
    %v991 = vlaneseq
    %v992 = vshrl.u32 %v991, 7
    %v993 = vsub.s32 0, %v992
    %v994 = vrot.slane %v989, %v993
    %v996 = vadd.f32 %v925, %v994
    %v997 = vadd.f32 %v926, %v994
    %v998 = vadd.f32 %v927, %v994
    %v999 = vadd.f32 %v928, %v994
    %v1000 = vadd.f32 %v929, %v994
    %v1001 = vadd.f32 %v930, %v994
    %v1002 = vadd.f32 %v931, %v994
    %v1003 = vadd.f32 %v932, %v994
    %v1004 = vadd.f32 %v933, %v994
    %v1005 = vadd.f32 %v934, %v994
    %v1006 = vadd.f32 %v935, %v994
    %v1007 = vadd.f32 %v936, %v994
    %v1008 = vadd.f32 %v937, %v994
    %v1009 = vadd.f32 %v938, %v994
    %v1010 = vadd.f32 %v939, %v994
    %v1011 = vadd.f32 %v940, %v994
    %v1012 = vadd.f32 %v941, %v994
    %v1013 = vadd.f32 %v942, %v994
    %v1014 = vadd.f32 %v943, %v994
    %v1015 = vadd.f32 %v944, %v994
    %v1016 = vadd.f32 %v945, %v994
    %v1017 = vadd.f32 %v946, %v994
    %v1018 = vadd.f32 %v947, %v994
    %v1019 = vadd.f32 %v948, %v994
    %v1020 = vadd.f32 %v949, %v994
    %v1021 = vadd.f32 %v950, %v994
    %v1022 = vadd.f32 %v951, %v994
    %v1023 = vadd.f32 %v952, %v994
    %v1024 = vadd.f32 %v953, %v994
    %v1025 = vadd.f32 %v954, %v994
    %v1026 = vadd.f32 %v955, %v994
    %v1027 = vadd.f32 %v956, %v994
    %v1028 = vadd.f32 %v957, %v994
    %v1029 = vadd.f32 %v958, %v994
    %v1030 = vadd.f32 %v959, %v994
    %v1031 = vadd.f32 %v960, %v994
    %v1032 = vadd.f32 %v961, %v994
    %v1033 = vadd.f32 %v962, %v994
    %v1034 = vadd.f32 %v963, %v994
    %v1035 = vadd.f32 %v964, %v994
    %v1036 = vadd.f32 %v965, %v994
    %v1037 = vadd.f32 %v966, %v994
    %v1038 = vadd.f32 %v967, %v994
    %v1039 = vadd.f32 %v968, %v994
    %v1040 = vadd.f32 %v969, %v994
    %v1041 = vadd.f32 %v970, %v994
    %v1042 = vadd.f32 %v971, %v994
    %v1043 = vadd.f32 %v972, %v994
    %v1044 = vadd.f32 %v973, %v994
    %v1045 = vadd.f32 %v974, %v994
    %v1046 = vadd.f32 %v975, %v994
    %v1047 = vadd.f32 %v976, %v994
    %v1048 = vadd.f32 %v977, %v994
    %v1049 = vadd.f32 %v978, %v994
    %v1050 = vadd.f32 %v979, %v994
    %v1051 = vadd.f32 %v980, %v994
    %v1052 = vadd.f32 %v981, %v994
    %v1053 = vadd.f32 %v982, %v994
    %v1054 = vadd.f32 %v983, %v994
    %v1055 = vadd.f32 %v984, %v994
    %v1056 = vadd.f32 %v985, %v994
    %v1057 = vadd.f32 %v986, %v994
    %v1058 = vadd.f32 %v987, %v994
    %v1059 = vadd.f32 %v988, %v994
    %1060 = vst.msk [vmem:[%s3] sm:$0xff] %vm857, %v996
    %1061 = vst.msk [vmem:[%s3 + $0x8] sm:$0xff] %vm857, %v997
    %1062 = vst.msk [vmem:[%s3 + $0x10] sm:$0xff] %vm857, %v998
    %1063 = vst.msk [vmem:[%s3 + $0x18] sm:$0xff] %vm857, %v999
    %1064 = vst.msk [vmem:[%s3 + $0x20] sm:$0xff] %vm857, %v1000
    %1065 = vst.msk [vmem:[%s3 + $0x28] sm:$0xff] %vm857, %v1001
    %1066 = vst.msk [vmem:[%s3 + $0x30] sm:$0xff] %vm857, %v1002
    %1067 = vst.msk [vmem:[%s3 + $0x38] sm:$0xff] %vm857, %v1003
    %1068 = vst.msk [vmem:[%s3 + $0x40] sm:$0xff] %vm857, %v1004
    %1069 = vst.msk [vmem:[%s3 + $0x48] sm:$0xff] %vm857, %v1005
    %1070 = vst.msk [vmem:[%s3 + $0x50] sm:$0xff] %vm857, %v1006
    %1071 = vst.msk [vmem:[%s3 + $0x58] sm:$0xff] %vm857, %v1007
    %1072 = vst.msk [vmem:[%s3 + $0x60] sm:$0xff] %vm857, %v1008
    %1073 = vst.msk [vmem:[%s3 + $0x68] sm:$0xff] %vm857, %v1009
    %1074 = vst.msk [vmem:[%s3 + $0x70] sm:$0xff] %vm857, %v1010
    %1075 = vst.msk [vmem:[%s3 + $0x78] sm:$0xff] %vm857, %v1011
    %1076 = vst.msk [vmem:[%s3 + $0x80] sm:$0xff] %vm857, %v1012
    %1077 = vst.msk [vmem:[%s3 + $0x88] sm:$0xff] %vm857, %v1013
    %1078 = vst.msk [vmem:[%s3 + $0x90] sm:$0xff] %vm857, %v1014
    %1079 = vst.msk [vmem:[%s3 + $0x98] sm:$0xff] %vm857, %v1015
    %1080 = vst.msk [vmem:[%s3 + $0xa0] sm:$0xff] %vm857, %v1016
    %1081 = vst.msk [vmem:[%s3 + $0xa8] sm:$0xff] %vm857, %v1017
    %1082 = vst.msk [vmem:[%s3 + $0xb0] sm:$0xff] %vm857, %v1018
    %1083 = vst.msk [vmem:[%s3 + $0xb8] sm:$0xff] %vm857, %v1019
    %1084 = vst.msk [vmem:[%s3 + $0xc0] sm:$0xff] %vm857, %v1020
    %1085 = vst.msk [vmem:[%s3 + $0xc8] sm:$0xff] %vm857, %v1021
    %1086 = vst.msk [vmem:[%s3 + $0xd0] sm:$0xff] %vm857, %v1022
    %1087 = vst.msk [vmem:[%s3 + $0xd8] sm:$0xff] %vm857, %v1023
    %1088 = vst.msk [vmem:[%s3 + $0xe0] sm:$0xff] %vm857, %v1024
    %1089 = vst.msk [vmem:[%s3 + $0xe8] sm:$0xff] %vm857, %v1025
    %1090 = vst.msk [vmem:[%s3 + $0xf0] sm:$0xff] %vm857, %v1026
    %1091 = vst.msk [vmem:[%s3 + $0xf8] sm:$0xff] %vm857, %v1027
    %1092 = vst.msk [vmem:[%s3 + $0x100] sm:$0xff] %vm857, %v1028
    %1093 = vst.msk [vmem:[%s3 + $0x108] sm:$0xff] %vm857, %v1029
    %1094 = vst.msk [vmem:[%s3 + $0x110] sm:$0xff] %vm857, %v1030
    %1095 = vst.msk [vmem:[%s3 + $0x118] sm:$0xff] %vm857, %v1031
    %1096 = vst.msk [vmem:[%s3 + $0x120] sm:$0xff] %vm857, %v1032
    %1097 = vst.msk [vmem:[%s3 + $0x128] sm:$0xff] %vm857, %v1033
    %1098 = vst.msk [vmem:[%s3 + $0x130] sm:$0xff] %vm857, %v1034
    %1099 = vst.msk [vmem:[%s3 + $0x138] sm:$0xff] %vm857, %v1035
    %1100 = vst.msk [vmem:[%s3 + $0x140] sm:$0xff] %vm857, %v1036
    %1101 = vst.msk [vmem:[%s3 + $0x148] sm:$0xff] %vm857, %v1037
    %1102 = vst.msk [vmem:[%s3 + $0x150] sm:$0xff] %vm857, %v1038
    %1103 = vst.msk [vmem:[%s3 + $0x158] sm:$0xff] %vm857, %v1039
    %1104 = vst.msk [vmem:[%s3 + $0x160] sm:$0xff] %vm857, %v1040
    %1105 = vst.msk [vmem:[%s3 + $0x168] sm:$0xff] %vm857, %v1041
    %1106 = vst.msk [vmem:[%s3 + $0x170] sm:$0xff] %vm857, %v1042
    %1107 = vst.msk [vmem:[%s3 + $0x178] sm:$0xff] %vm857, %v1043
    %1108 = vst.msk [vmem:[%s3 + $0x180] sm:$0xff] %vm857, %v1044
    %1109 = vst.msk [vmem:[%s3 + $0x188] sm:$0xff] %vm857, %v1045
    %1110 = vst.msk [vmem:[%s3 + $0x190] sm:$0xff] %vm857, %v1046
    %1111 = vst.msk [vmem:[%s3 + $0x198] sm:$0xff] %vm857, %v1047
    %1112 = vst.msk [vmem:[%s3 + $0x1a0] sm:$0xff] %vm857, %v1048
    %1113 = vst.msk [vmem:[%s3 + $0x1a8] sm:$0xff] %vm857, %v1049
    %1114 = vst.msk [vmem:[%s3 + $0x1b0] sm:$0xff] %vm857, %v1050
    %1115 = vst.msk [vmem:[%s3 + $0x1b8] sm:$0xff] %vm857, %v1051
    %1116 = vst.msk [vmem:[%s3 + $0x1c0] sm:$0xff] %vm857, %v1052
    %1117 = vst.msk [vmem:[%s3 + $0x1c8] sm:$0xff] %vm857, %v1053
    %1118 = vst.msk [vmem:[%s3 + $0x1d0] sm:$0xff] %vm857, %v1054
    %1119 = vst.msk [vmem:[%s3 + $0x1d8] sm:$0xff] %vm857, %v1055
    %1120 = vst.msk [vmem:[%s3 + $0x1e0] sm:$0xff] %vm857, %v1056
    %1121 = vst.msk [vmem:[%s3 + $0x1e8] sm:$0xff] %vm857, %v1057
    %1122 = vst.msk [vmem:[%s3 + $0x1f0] sm:$0xff] %vm857, %v1058
    %1123 = vst.msk [vmem:[%s3 + $0x1f8] sm:$0xff] %vm857, %v1059
  $region21: #{tpu_custom_call.1} parent=0 // pred_fallthru
    _
  // Predicated region
  $region22: #{tpu_custom_call.1} parent=0 // pred_check
    _
  $region23: #{tpu_custom_call.1} parent=0 // pred_check_branch
    %1125 = sbr.rel (0) target = $region25
  $region24: #{tpu_custom_call.1} parent=0 // pred_region
    _
  $region25: #{tpu_custom_call.1} parent=0 // pred_fallthru
    _
  // Predicated region
  $region26: #{tpu_custom_call.1} parent=0 // pred_check
    _
  $region27: #{tpu_custom_call.1} parent=0 // pred_check_branch
    %1127 = sbr.rel (0) target = $region29
  $region28: #{tpu_custom_call.1} parent=0 // pred_region
    _
  $region29: #{tpu_custom_call.1} parent=0 // pred_fallthru
    _

</llo_original>
